<compile_context>
chip_gen: v6e
topology: v6e:2x2x1
jax: 0.10.0
libtpu: 0.0.40
codegen_flags: <defaults>
</compile_context>

<pallas_src>
import jax
import jax.numpy as jnp
from jax.experimental import pallas as pl
from jax.experimental.pallas import tpu as pltpu


def _identity_kernel(x_ref, o_ref):
    # Elementwise copy of the current VMEM tile.
    o_ref[...] = x_ref[...]


# Single-shot path budget: with in+out double-buffering this stays well inside
# every generation's scoped VMEM (v5e 16 MiB default, v6e/v7x 32 MiB).
_SINGLE_BLOCK_BYTES = 4 * 1024 * 1024
# Per-block target for the tiled path (~4 MiB per buffer -> <=16 MiB pipelined,
# safe on v7x's 64 MiB physical VMEM and under the 32 MiB limit we request).
_TILE_BLOCK_BYTES = 4 * 1024 * 1024
_VMEM_LIMIT_BYTES = 32 * 1024 * 1024


def identity(x: jax.Array) -> jax.Array:
    """Pallas implementation of Identity.forward (y = x).

    NOTE: at the JAX level `return x` is the zero-cost implementation; the
    pallas_call exists to satisfy the kernel requirement and aliases its
    output to the input so no extra HBM buffer is needed when the caller
    donates x.
    """
    itemsize = x.dtype.itemsize
    nbytes = x.size * itemsize

    # ---- Fast path: one full-array block, one grid step, no reshapes. ----
    # Also used as a fallback when the flat size is not a multiple of 128
    # (rare for NCHW activations); block_shape == full dims so no (8,128)
    # divisibility requirement applies.
    if nbytes <= _SINGLE_BLOCK_BYTES or x.size % 128 != 0:
        return pl.pallas_call(
            _identity_kernel,
            out_shape=jax.ShapeDtypeStruct(x.shape, x.dtype),
            input_output_aliases={0: 0},
        )(x)

    # ---- Large-array path: lane-dense 2-D tiling with a cdiv grid. ----
    # Widest lane dimension (multiple of 128) that divides the flat size.
    width = 128
    for cand in (4096, 2048, 1024, 512, 256):
        if x.size % cand == 0:
            width = cand
            break
    rows = x.size // width
    x2d = x.reshape(rows, width)  # metadata-only reshape of a contiguous array

    # Sublane granularity for packed dtypes: 8 rows (f32), 16 (bf16), 32 (i8/fp8).
    sub = {4: 8, 2: 16, 1: 32}.get(itemsize, 8)

    block_rows = min(rows, max(sub, _TILE_BLOCK_BYTES // (width * itemsize)))
    block_rows = max(sub, (block_rows // sub) * sub)

    grid = (pl.cdiv(rows, block_rows),)  # ragged last block is masked by Pallas

    y2d = pl.pallas_call(
        _identity_kernel,
        out_shape=jax.ShapeDtypeStruct((rows, width), x.dtype),
        grid_spec=pltpu.PrefetchScalarGridSpec(
            num_scalar_prefetch=0,
            grid=grid,
            in_specs=[pl.BlockSpec((block_rows, width), lambda i: (i, 0))],
            out_specs=pl.BlockSpec((block_rows, width), lambda i: (i, 0)),
        ),
        input_output_aliases={0: 0},
        compiler_params=pltpu.CompilerParams(
            dimension_semantics=("parallel",),
            vmem_limit_bytes=_VMEM_LIMIT_BYTES,
        ),
    )(x2d)
    return y2d.reshape(x.shape)


if __name__ == "__main__":
    key = jax.random.PRNGKey(0)
    # Identity has no parameters; representative small NCHW activation shape.
    shape = (2, 4, 16, 16)
    x = jax.random.normal(key, shape, dtype=jnp.float32)
    # Same values regenerated from the same key: x itself is donated below.
    x_expected = jax.random.normal(key, shape, dtype=jnp.float32)

    # Donate the input so the aliased output reuses x's HBM buffer.
    identity_fn = jax.jit(identity, donate_argnums=(0,))

    y = identity_fn(x)
    jax.block_until_ready(y)

    assert y.shape == shape and y.dtype == jnp.float32
    assert bool(jnp.allclose(y, x_expected))
    print("KERNEL_OK")
</pallas_src>

<mosaic_0001>
module attributes {stable_mosaic.version = 11 : i64} {
  func.func @_identity_kernel(%arg0: memref<2x4x16x16xf32, #tpu.memory_space<vmem>>, %arg1: memref<2x4x16x16xf32, #tpu.memory_space<vmem>>) attributes {dimension_semantics = [], scalar_prefetch = 0 : i64, scratch_operands = 0 : i64, tpu.core_type = #tpu.core_type<tc>} {
    %c0 = arith.constant 0 : index
    %c0_0 = arith.constant 0 : index
    %c0_1 = arith.constant 0 : index
    %c0_2 = arith.constant 0 : index
    %0 = vector.load %arg0[%c0, %c0_0, %c0_1, %c0_2] : memref<2x4x16x16xf32, #tpu.memory_space<vmem>>, vector<2x4x16x16xf32>
    %c0_3 = arith.constant 0 : index
    %c0_4 = arith.constant 0 : index
    %c0_5 = arith.constant 0 : index
    %c0_6 = arith.constant 0 : index
    %1 = vector.load %arg1[%c0_3, %c0_4, %c0_5, %c0_6] : memref<2x4x16x16xf32, #tpu.memory_space<vmem>>, vector<2x4x16x16xf32>
    tpu.vector_store %arg1[%c0_3, %c0_4, %c0_5, %c0_6], %0 {strides = array<i32>} : memref<2x4x16x16xf32, #tpu.memory_space<vmem>>, vector<2x4x16x16xf32>,
    return
  }
}

</mosaic_0001>

<llo_original>
// kernel: identity.1
$region0: #{identity.1}
  #allocation0 [shape = 'u32[]', space=smem, size = 0x4, offset = 0x4, fixed_abs, tag = 'smem constant byte address 0x4 - core index']
  #allocation1 [shape = 'u32[144,128]{1,0:T(1,128)}', space=vmem, size = 0x12000, scoped, tag = 'internal scratch']
  %s0 = inlined_call_operand.hbm [shape: f32[2,4,16,16], index: 0, kind: input, shape index: {}, may-alias: {0,1}]
  %s1 = inlined_call_operand.hbm [shape: f32[2,4,16,16], index: 1, kind: output, shape index: {}, may-alias: {0,1}]
  %s2 = sld [smem:[#allocation0]]
  $region18: #{identity.1} parent=0
    _
  %s4 = ssub.s32 1, %s2
  %s5 = scalar_select 0, %s4, %s2
  $region1: #{identity.1} parent=0
    #allocation2 [shape = 'u8[65536]{0}', space=vmem, size = 0x10000, scoped, tag = 'input window, operand 0, single buffered']
    #allocation3 [shape = 's32[1]{0}', space=sflag, size = 0x4, scoped, tag = 'scoped memory for identity.1']
    #allocation4 [shape = 's32[1]{0}', space=sflag, size = 0x4, scoped, tag = 'scoped memory for identity.1']
    #allocation5 [shape = 'u8[65536]{0}', space=vmem, size = 0x10000, scoped, tag = 'output window, operand 0, single buffered']
    %6 = vsyncpa [#allocation3], 0
    %7 = vsyncpa [#allocation4], 0
    // Predicated region
    $region2: #{identity.1} parent=1 // pred_check
      _
    $region3: #{identity.1} parent=1 // pred_check_branch
      %9 = sbr.rel (0) target = $region5
    $region4: #{identity.1} parent=1 // pred_region
      %s11 = ssub.s32 2048, 2048
      %12 = vsyncadd [#allocation3], %s11
      %s13 = sshll.u32 [#allocation2], 4
      %s14 = int_to_ptr.vmem [resolvable:$true] %s13
      %19 = dma.hbm_to_vmem [thread:$0]  %s0, 2048, %s14, [#allocation3], 128, 128, 8
    $region5: #{identity.1} parent=1 // pred_fallthru
      _
    // Predicated region
    $region6: #{identity.1} parent=1 // pred_check
      _
    $region7: #{identity.1} parent=1 // pred_check_branch
      %21 = sbr.rel (0) target = $region9
    $region8: #{identity.1} parent=1 // pred_region
      %22 = dma.done [#allocation3], 2048
    $region9: #{identity.1} parent=1 // pred_fallthru
      _
    %v23 = vld [vmem:[#allocation2] sm:$0xff]
    %v24 = vld [vmem:[#allocation2 + $0x8] sm:$0xff]
    %v25 = vld [vmem:[#allocation2 + $0x10] sm:$0xff]
    %v26 = vld [vmem:[#allocation2 + $0x18] sm:$0xff]
    %v27 = vld [vmem:[#allocation2 + $0x20] sm:$0xff]
    %v28 = vld [vmem:[#allocation2 + $0x28] sm:$0xff]
    %v29 = vld [vmem:[#allocation2 + $0x30] sm:$0xff]
    %v30 = vld [vmem:[#allocation2 + $0x38] sm:$0xff]
    %v31 = vld [vmem:[#allocation2 + $0x40] sm:$0xff]
    %v32 = vld [vmem:[#allocation2 + $0x48] sm:$0xff]
    %v33 = vld [vmem:[#allocation2 + $0x50] sm:$0xff]
    %v34 = vld [vmem:[#allocation2 + $0x58] sm:$0xff]
    %v35 = vld [vmem:[#allocation2 + $0x60] sm:$0xff]
    %v36 = vld [vmem:[#allocation2 + $0x68] sm:$0xff]
    %v37 = vld [vmem:[#allocation2 + $0x70] sm:$0xff]
    %v38 = vld [vmem:[#allocation2 + $0x78] sm:$0xff]
    %vm39 = vcmask 130048
    %40 = vst.msk [vmem:[#allocation5] sm:$0xff] %vm39, %v23
    %41 = vst.msk [vmem:[#allocation5 + $0x8] sm:$0xff] %vm39, %v24
    %42 = vst.msk [vmem:[#allocation5 + $0x10] sm:$0xff] %vm39, %v25
    %43 = vst.msk [vmem:[#allocation5 + $0x18] sm:$0xff] %vm39, %v26
    %44 = vst.msk [vmem:[#allocation5 + $0x20] sm:$0xff] %vm39, %v27
    %45 = vst.msk [vmem:[#allocation5 + $0x28] sm:$0xff] %vm39, %v28
    %46 = vst.msk [vmem:[#allocation5 + $0x30] sm:$0xff] %vm39, %v29
    %47 = vst.msk [vmem:[#allocation5 + $0x38] sm:$0xff] %vm39, %v30
    %48 = vst.msk [vmem:[#allocation5 + $0x40] sm:$0xff] %vm39, %v31
    %49 = vst.msk [vmem:[#allocation5 + $0x48] sm:$0xff] %vm39, %v32
    %50 = vst.msk [vmem:[#allocation5 + $0x50] sm:$0xff] %vm39, %v33
    %51 = vst.msk [vmem:[#allocation5 + $0x58] sm:$0xff] %vm39, %v34
    %52 = vst.msk [vmem:[#allocation5 + $0x60] sm:$0xff] %vm39, %v35
    %53 = vst.msk [vmem:[#allocation5 + $0x68] sm:$0xff] %vm39, %v36
    %54 = vst.msk [vmem:[#allocation5 + $0x70] sm:$0xff] %vm39, %v37
    %55 = vst.msk [vmem:[#allocation5 + $0x78] sm:$0xff] %vm39, %v38
    // Predicated region
    $region10: #{identity.1} parent=1 // pred_check
      _
    $region11: #{identity.1} parent=1 // pred_check_branch
      %57 = sbr.rel (0) target = $region13
    $region12: #{identity.1} parent=1 // pred_region
      %s59 = ssub.s32 2048, 2048
      %60 = vsyncadd [#allocation4], %s59
      %s61 = sshll.u32 [#allocation5], 4
      %s62 = int_to_ptr.vmem [resolvable:$true] %s61
      %67 = dma.vmem_to_hbm [thread:$0]  %s62, 2048, %s1, [#allocation4], 128, 128, 8
    $region13: #{identity.1} parent=1 // pred_fallthru
      _
    // Predicated region
    $region14: #{identity.1} parent=1 // pred_check
      _
    $region15: #{identity.1} parent=1 // pred_check_branch
      %69 = sbr.rel (0) target = $region17
    $region16: #{identity.1} parent=1 // pred_region
      %70 = dma.done [#allocation4], 2048
    $region17: #{identity.1} parent=1 // pred_fallthru
      _
    %71 = vsyncpa [#allocation3], 1
    %72 = vsyncpa [#allocation4], 1

</llo_original>
